<compile_context>
chip_gen: v6e
topology: v6e:2x2x1
jax: 0.10.0
libtpu: 0.0.40
codegen_flags: <defaults>
</compile_context>

<pallas_src>
import functools

import jax
import jax.numpy as jnp
from jax import lax
from jax.experimental import pallas as pl
from jax.experimental.pallas import tpu as pltpu


def _round_up(n, m):
    return ((n + m - 1) // m) * m


def _self_attention_kernel(x_ref, wqkv_ref, o_ref, *, seq_len, d_out_p):
    x = x_ref[...]          # (S_p, d_in_p)        bf16
    wqkv = wqkv_ref[...]    # (d_in_p, 3*d_out_p)  bf16, scale folded into Q cols

    # Fused QKV projection: one MXU pass (bf16 in, f32 accumulate).
    qkv = jnp.dot(x, wqkv, preferred_element_type=jnp.float32)  # (S_p, 3*Dp) f32
    q = qkv[:, :d_out_p]                 # lane-aligned static slices
    k = qkv[:, d_out_p:2 * d_out_p]
    v = qkv[:, 2 * d_out_p:]

    # scores = Q @ K^T, contracting the last dim of both operands on the MXU
    # (no materialized transpose / XLU op).
    scores = lax.dot_general(q.astype(jnp.bfloat16), k.astype(jnp.bfloat16),
                             (((1,), (1,)), ((), ())),
                             preferred_element_type=jnp.float32)  # (S_p, S_p)

    # Mask the padded key columns (>= seq_len) so they get zero softmax weight.
    col = lax.broadcasted_iota(jnp.int32, scores.shape, dimension=1)
    scores = jnp.where(col < seq_len, scores, jnp.float32(-1e30))

    # Numerically-stable softmax along the last axis, all in f32 (VPU + EUP).
    m = jnp.max(scores, axis=-1, keepdims=True)
    e = jnp.exp(scores - m)
    denom = jnp.sum(e, axis=-1, keepdims=True)                    # (S_p, 1)
    w = e * pl.reciprocal(denom, approx=True)                     # (S_p, S_p)

    ctx = jnp.dot(w.astype(jnp.bfloat16), v.astype(jnp.bfloat16),
                  preferred_element_type=jnp.float32)             # (S_p, Dp)
    o_ref[...] = ctx.astype(o_ref.dtype)                          # lane-dense store


def self_attention_v1(x, w_query, w_key, w_value):
    """x: (S, d_in) float32; w_*: (d_in, d_out) float32 (already the transpose of
    nn.Linear's (d_out, d_in) weight, so y = x @ w == nn.Linear(x))."""
    S, d_in = x.shape
    d_out = w_query.shape[1]

    # Fold the 1/sqrt(d_out) softmax scale into W_query (d_out = true head dim,
    # matching `keys.shape[-1] ** 0.5` in the PyTorch module). Done in f32, then
    # cast once to bf16 host-side.
    wq_scaled = w_query.astype(jnp.float32) * (d_out ** -0.5)

    # Padding (all exact):
    #   * d_in -> multiple of 8 (sublane): contraction dim; zero rows/cols of
    #     the weight contribute nothing.  Block == full array so the (8,128)
    #     divisibility rule is satisfied trivially.
    #   * d_out -> multiple of 128 (lane-dense intermediates + output store);
    #     zero columns are sliced off outside.
    #   * S -> multiple of 8 (sublane): padded key columns are masked to -1e30
    #     in-kernel; padded query rows are sliced off outside.
    d_in_p = _round_up(d_in, 8)
    d_out_p = _round_up(d_out, 128)
    s_p = _round_up(S, 8)

    x_p = (jnp.zeros((s_p, d_in_p), jnp.float32)
           .at[:S, :d_in].set(x.astype(jnp.float32))
           .astype(jnp.bfloat16))

    def _pad_w(w):
        return (jnp.zeros((d_in_p, d_out_p), jnp.float32)
                .at[:d_in, :d_out].set(w.astype(jnp.float32)))

    # Fused (d_in_p, 3*d_out_p) weight slab, cast to bf16 on the host so the
    # kernel DMAs half the bytes and does no in-kernel cast of the weights.
    wqkv = jnp.concatenate(
        [_pad_w(wq_scaled), _pad_w(w_key), _pad_w(w_value)],
        axis=1).astype(jnp.bfloat16)                     # (d_in_p, 3*Dp) bf16

    full = lambda shape: pl.BlockSpec(shape, lambda: (0,) * len(shape))
    kernel = functools.partial(_self_attention_kernel,
                               seq_len=S, d_out_p=d_out_p)

    flops = 2 * s_p * d_in_p * 3 * d_out_p + 4 * s_p * s_p * d_out_p
    bytes_accessed = (2 * (s_p * d_in_p + d_in_p * 3 * d_out_p)   # bf16 inputs
                      + 4 * s_p * d_out_p)                        # f32 output

    out_p = pl.pallas_call(
        kernel,
        out_shape=jax.ShapeDtypeStruct((s_p, d_out_p), jnp.float32),
        grid_spec=pltpu.PrefetchScalarGridSpec(
            num_scalar_prefetch=0,
            grid=(),
            in_specs=[full((s_p, d_in_p)), full((d_in_p, 3 * d_out_p))],
            out_specs=full((s_p, d_out_p)),
        ),
        cost_estimate=pl.CostEstimate(flops=flops,
                                      transcendentals=s_p * s_p,
                                      bytes_accessed=bytes_accessed),
    )(x_p, wqkv)

    return out_p[:S, :d_out]


def _reference(x, wq, wk, wv):
    q = x @ wq
    k = x @ wk
    v = x @ wv
    s = (q @ k.T) / jnp.sqrt(jnp.float32(k.shape[-1]))
    w = jax.nn.softmax(s, axis=-1)
    return w @ v


if __name__ == "__main__":
    # Exact `inputs` tensor from the PyTorch module: seq=6, d_in=3; d_out=2.
    x = jnp.array([[0.43, 0.15, 0.89],
                   [0.55, 0.87, 0.66],
                   [0.57, 0.85, 0.64],
                   [0.22, 0.58, 0.33],
                   [0.77, 0.25, 0.10],
                   [0.05, 0.80, 0.55]], dtype=jnp.float32)
    S, d_in = x.shape
    d_out = 2

    key = jax.random.PRNGKey(0)
    kq, kk, kv = jax.random.split(key, 3)

    # nn.Linear(d_in, d_out, bias=False) init: U(-1/sqrt(d_in), 1/sqrt(d_in)),
    # stored as the transpose (d_in, d_out).
    bound = 1.0 / (d_in ** 0.5)
    w_query = jax.random.uniform(kq, (d_in, d_out), jnp.float32, -bound, bound)
    w_key = jax.random.uniform(kk, (d_in, d_out), jnp.float32, -bound, bound)
    w_value = jax.random.uniform(kv, (d_in, d_out), jnp.float32, -bound, bound)

    out = self_attention_v1(x, w_query, w_key, w_value)
    out = jax.block_until_ready(out)

    ref = _reference(x, w_query, w_key, w_value)
    assert out.shape == (S, d_out)
    # bf16 MXU inputs (~2^-8 rel) + approx (EUP) reciprocal in the softmax
    # normalize loosen tolerance vs the pure-f32 reference; values are O(1),
    # so 2e-2 is comfortably conservative.
    assert jnp.allclose(out, ref, atol=2e-2, rtol=2e-2), "mismatch vs reference"

    print("KERNEL_OK")
</pallas_src>

<mosaic_0001>
module attributes {stable_mosaic.version = 11 : i64} {
  func.func @_self_attention_kernel(%arg0: memref<8x8xbf16, #tpu.memory_space<vmem>>, %arg1: memref<8x384xbf16, #tpu.memory_space<vmem>>, %arg2: memref<8x128xf32, #tpu.memory_space<vmem>>) attributes {dimension_semantics = [], scalar_prefetch = 0 : i64, scratch_operands = 0 : i64, tpu.core_type = #tpu.core_type<tc>} {
    %c0 = arith.constant 0 : index
    %c0_0 = arith.constant 0 : index
    %0 = vector.load %arg0[%c0, %c0_0] : memref<8x8xbf16, #tpu.memory_space<vmem>>, vector<8x8xbf16>
    %c0_1 = arith.constant 0 : index
    %c0_2 = arith.constant 0 : index
    %1 = vector.load %arg1[%c0_1, %c0_2] : memref<8x384xbf16, #tpu.memory_space<vmem>>, vector<8x384xbf16>
    %cst = arith.constant dense<0.000000e+00> : vector<8x384xf32>
    %2 = tpu.matmul %0, %1, %cst {dimension_numbers = #tpu.dot_dimension_numbers<[1], [0], [0], [1], [0, 0, 1, 1], [], []>} : vector<8x8xbf16>, vector<8x384xbf16>, vector<8x384xf32> -> vector<8x384xf32>
    %3 = vector.extract_strided_slice %2 {offsets = [0, 0], sizes = [8, 128], strides = [1, 1]} : vector<8x384xf32> to vector<8x128xf32>
    %4 = vector.extract_strided_slice %2 {offsets = [0, 128], sizes = [8, 128], strides = [1, 1]} : vector<8x384xf32> to vector<8x128xf32>
    %5 = vector.extract_strided_slice %2 {offsets = [0, 256], sizes = [8, 128], strides = [1, 1]} : vector<8x384xf32> to vector<8x128xf32>
    %6 = arith.truncf %3 : vector<8x128xf32> to vector<8x128xbf16>
    %7 = arith.truncf %4 : vector<8x128xf32> to vector<8x128xbf16>
    %cst_3 = arith.constant dense<0.000000e+00> : vector<8x8xf32>
    %8 = tpu.matmul %6, %7, %cst_3 {dimension_numbers = #tpu.dot_dimension_numbers<[1], [1], [0], [0], [0, 0, 1, 0], [], []>} : vector<8x128xbf16>, vector<8x128xbf16>, vector<8x8xf32> -> vector<8x8xf32>
    %9 = tpu.iota {dimensions = array<i32: 1>} : vector<8x8xi32>
    %c6_i32 = arith.constant 6 : i32
    %10 = vector.broadcast %c6_i32 : i32 to vector<8x8xi32>
    %11 = arith.cmpi slt, %9, %10 : vector<8x8xi32>
    %cst_4 = arith.constant -1.000000e+30 : f32
    %12 = vector.broadcast %cst_4 : f32 to vector<8x8xf32>
    %13 = arith.select %11, %8, %12 : vector<8x8xi1>, vector<8x8xf32>
    %cst_5 = arith.constant dense<0xFF800000> : vector<8xf32>
    %14 = vector.multi_reduction <maximumf>, %13, %cst_5 [1] : vector<8x8xf32> to vector<8xf32>
    %15 = vector.shape_cast %14 : vector<8xf32> to vector<8x1xf32>
    %16 = vector.broadcast %15 : vector<8x1xf32> to vector<8x8xf32>
    %17 = arith.subf %13, %16 : vector<8x8xf32>
    %18 = math.exp %17 : vector<8x8xf32>
    %cst_6 = arith.constant dense<0.000000e+00> : vector<8xf32>
    %19 = vector.multi_reduction <add>, %18, %cst_6 [1] : vector<8x8xf32> to vector<8xf32>
    %20 = vector.shape_cast %19 : vector<8xf32> to vector<8x1xf32>
    %21 = tpu.reciprocal %20 {approx = true} : vector<8x1xf32> -> vector<8x1xf32>
    %22 = vector.broadcast %21 : vector<8x1xf32> to vector<8x8xf32>
    %23 = arith.mulf %18, %22 : vector<8x8xf32>
    %24 = arith.truncf %23 : vector<8x8xf32> to vector<8x8xbf16>
    %25 = arith.truncf %5 : vector<8x128xf32> to vector<8x128xbf16>
    %cst_7 = arith.constant dense<0.000000e+00> : vector<8x128xf32>
    %26 = tpu.matmul %24, %25, %cst_7 {dimension_numbers = #tpu.dot_dimension_numbers<[1], [0], [0], [1], [0, 0, 1, 1], [], []>} : vector<8x8xbf16>, vector<8x128xbf16>, vector<8x128xf32> -> vector<8x128xf32>
    %c0_8 = arith.constant 0 : index
    %c0_9 = arith.constant 0 : index
    %27 = vector.load %arg2[%c0_8, %c0_9] : memref<8x128xf32, #tpu.memory_space<vmem>>, vector<8x128xf32>
    tpu.vector_store %arg2[%c0_8, %c0_9], %26 {strides = array<i32>} : memref<8x128xf32, #tpu.memory_space<vmem>>, vector<8x128xf32>,
    return
  }
}

</mosaic_0001>

<llo_original>
// kernel: tpu_custom_call.1
$region0: #{tpu_custom_call.1}
  #allocation0 [shape = 'u32[]', space=smem, size = 0x4, offset = 0x4, fixed_abs, tag = 'smem constant byte address 0x4 - core index']
  #allocation1 [shape = 'u32[144,128]{1,0:T(1,128)}', space=vmem, size = 0x12000, scoped, tag = 'internal scratch']
  %s0 = inlined_call_operand.hbm [shape: bf16[8,8], index: 0, kind: input, shape index: {}]
  %s1 = inlined_call_operand.hbm [shape: bf16[8,384], index: 1, kind: input, shape index: {}]
  %s2 = inlined_call_operand.hbm [shape: f32[8,128], index: 2, kind: output, shape index: {}]
  %s3 = sld [smem:[#allocation0]]
  $region26: #{tpu_custom_call.1} parent=0
    _
  %s5 = ssub.s32 1, %s3
  %s6 = scalar_select 0, %s5, %s3
  $region1: #{tpu_custom_call.1} parent=0
    #allocation2 [shape = 'u8[2048]{0}', space=vmem, size = 0x800, scoped, tag = 'input window, operand 0, single buffered']
    #allocation3 [shape = 's32[1]{0}', space=sflag, size = 0x4, scoped, tag = 'scoped memory for tpu_custom_call.1']
    #allocation4 [shape = 's32[1]{0}', space=sflag, size = 0x4, scoped, tag = 'scoped memory for tpu_custom_call.1']
    #allocation5 [shape = 'u8[6144]{0}', space=vmem, size = 0x1800, scoped, tag = 'input window, operand 1, single buffered']
    #allocation6 [shape = 's32[1]{0}', space=sflag, size = 0x4, scoped, tag = 'scoped memory for tpu_custom_call.1']
    #allocation7 [shape = 'u8[4096]{0}', space=vmem, size = 0x1000, scoped, tag = 'output window, operand 0, single buffered']
    %7 = vsyncpa [#allocation3], 0
    %8 = vsyncpa [#allocation6], 0
    %9 = vsyncpa [#allocation4], 0
    // Predicated region
    $region2: #{tpu_custom_call.1} parent=1 // pred_check
      _
    $region3: #{tpu_custom_call.1} parent=1 // pred_check_branch
      %11 = sbr.rel (0) target = $region5
    $region4: #{tpu_custom_call.1} parent=1 // pred_region
      %s13 = ssub.s32 64, 64
      %14 = vsyncadd [#allocation3], %s13
      %s16 = sshll.u32 [#allocation2], 4
      %s17 = int_to_ptr.vmem [resolvable:$true] %s16
      %19 = dma.hbm_to_vmem [thread:$0]  %s0, 64, %s17, [#allocation3]
    $region5: #{tpu_custom_call.1} parent=1 // pred_fallthru
      _
    // Predicated region
    $region6: #{tpu_custom_call.1} parent=1 // pred_check
      _
    $region7: #{tpu_custom_call.1} parent=1 // pred_check_branch
      %21 = sbr.rel (0) target = $region9
    $region8: #{tpu_custom_call.1} parent=1 // pred_region
      %s23 = ssub.s32 192, 192
      %24 = vsyncadd [#allocation6], %s23
      %s26 = sshll.u32 [#allocation5], 4
      %s27 = int_to_ptr.vmem [resolvable:$true] %s26
      %29 = dma.hbm_to_vmem [thread:$0]  %s1, 192, %s27, [#allocation6]
    $region9: #{tpu_custom_call.1} parent=1 // pred_fallthru
      _
    // Predicated region
    $region10: #{tpu_custom_call.1} parent=1 // pred_check
      _
    $region11: #{tpu_custom_call.1} parent=1 // pred_check_branch
      %31 = sbr.rel (0) target = $region13
    $region12: #{tpu_custom_call.1} parent=1 // pred_region
      %32 = dma.done [#allocation3], 64
    $region13: #{tpu_custom_call.1} parent=1 // pred_fallthru
      _
    // Predicated region
    $region14: #{tpu_custom_call.1} parent=1 // pred_check
      _
    $region15: #{tpu_custom_call.1} parent=1 // pred_check_branch
      %34 = sbr.rel (0) target = $region17
    $region16: #{tpu_custom_call.1} parent=1 // pred_region
      %35 = dma.done [#allocation6], 192
    $region17: #{tpu_custom_call.1} parent=1 // pred_fallthru
      _
    %v37 = vld [vmem:[#allocation2] sm:$0xf]
    %v38 = vld [vmem:[#allocation5] sm:$0xff]
    %v39 = vld [vmem:[#allocation5 + $0x8] sm:$0xf]
    %v42 = vunpack.c.l.b16 %v38
    %v43 = vunpack.c.h.b16 %v38
    %v44 = vunpack.c.l.b16 %v39
    %v45 = vpack.c.b16 %v42, %v42
    %v46 = vpack.c.b16 %v43, %v43
    %v47 = vpack.c.b16 %v44, %v44
    %vm48 = vcmask 64512
    %v50 = vsel %vm48, %v37, 0
    %vm52 = vcmask 1043456
    %v54 = vsel %vm52, %v45, 0
    %v57 = vsel %vm52, %v46, 0
    %v60 = vsel %vm52, %v47, 0
    %62 = vmatprep.subr.bf16.mxu0 0
    %63 = vmatpush1.bf16.msra.mxu0 0
    %64 = vmatprep.subr.bf16.mxu0 0
    %65 = vmatpush1.bf16.msra.mxu0 0
    %66 = vmatprep.subr.bf16.mxu0 0
    %67 = vmatpush1.bf16.msra.mxu0 0
    %68 = vmatprep.subr.bf16.mxu0 0
    %69 = vmatpush1.bf16.msra.mxu0 0
    %70 = vmatprep.subr.bf16.mxu0 0
    %71 = vmatpush1.bf16.msra.mxu0 0
    %72 = vmatprep.subr.bf16.mxu0 0
    %73 = vmatpush1.bf16.msra.mxu0 0
    %74 = vmatprep.subr.bf16.mxu0 0
    %75 = vmatpush1.bf16.msra.mxu0 0
    %76 = vmatprep.subr.bf16.mxu0 %v57
    %77 = vmatpush1.bf16.msra.mxu0 %v54
    %78 = vmatprep.subr.bf16.mxu0 0
    %79 = vmatpush2.bf16.msra.mxu0 0
    %80 = vmatprep.subr.bf16.mxu0 0
    %81 = vmatpush2.bf16.msra.mxu0 0
    %82 = vmatprep.subr.bf16.mxu0 0
    %83 = vmatpush2.bf16.msra.mxu0 0
    %84 = vmatprep.subr.bf16.mxu0 0
    %85 = vmatpush2.bf16.msra.mxu0 0
    %86 = vmatprep.subr.bf16.mxu0 0
    %87 = vmatpush2.bf16.msra.mxu0 0
    %88 = vmatprep.subr.bf16.mxu0 0
    %89 = vmatpush2.bf16.msra.mxu0 0
    %90 = vmatprep.subr.bf16.mxu0 0
    %91 = vmatpush2.bf16.msra.mxu0 0
    %92 = vmatprep.subr.bf16.mxu0 0
    %93 = vmatpush2.bf16.msra.mxu0 0
    %94 = vmatprep.mubr.bf16.mxu0 0
    %95 = vmatmul.mubr.bf16.gmra.mxu0 %v50
    %v96 = vpop.f32.mrf.mxu0
    %v97 = vadd.f32 0.0, %v96
    %v98 = vpop.f32.mrf.mxu0
    %v99 = vadd.f32 0.0, %v98
    %v100 = vpop.f32.mrf.mxu0
    %v101 = vpop.f32.mrf.mxu0
    %102 = vdwg.mxu0
    %103 = vmatprep.subr.bf16.mxu0 0
    %104 = vmatpush1.bf16.msra.mxu0 0
    %105 = vmatprep.subr.bf16.mxu0 0
    %106 = vmatpush1.bf16.msra.mxu0 0
    %107 = vmatprep.subr.bf16.mxu0 0
    %108 = vmatpush1.bf16.msra.mxu0 0
    %109 = vmatprep.subr.bf16.mxu0 0
    %110 = vmatpush1.bf16.msra.mxu0 0
    %111 = vmatprep.subr.bf16.mxu0 0
    %112 = vmatpush1.bf16.msra.mxu0 0
    %113 = vmatprep.subr.bf16.mxu0 0
    %114 = vmatpush1.bf16.msra.mxu0 0
    %115 = vmatprep.subr.bf16.mxu0 0
    %116 = vmatpush1.bf16.msra.mxu0 0
    %117 = vmatprep.subr.bf16.mxu0 0
    %118 = vmatpush1.bf16.msra.mxu0 %v60
    %119 = vmatprep.subr.bf16.mxu0 0
    %120 = vmatpush2.bf16.msra.mxu0 0
    %121 = vmatprep.subr.bf16.mxu0 0
    %122 = vmatpush2.bf16.msra.mxu0 0
    %123 = vmatprep.subr.bf16.mxu0 0
    %124 = vmatpush2.bf16.msra.mxu0 0
    %125 = vmatprep.subr.bf16.mxu0 0
    %126 = vmatpush2.bf16.msra.mxu0 0
    %127 = vmatprep.subr.bf16.mxu0 0
    %128 = vmatpush2.bf16.msra.mxu0 0
    %129 = vmatprep.subr.bf16.mxu0 0
    %130 = vmatpush2.bf16.msra.mxu0 0
    %131 = vmatprep.subr.bf16.mxu0 0
    %132 = vmatpush2.bf16.msra.mxu0 0
    %133 = vmatprep.subr.bf16.mxu0 0
    %134 = vmatpush2.bf16.msra.mxu0 0
    %135 = vmatprep.mubr.bf16.mxu0 0
    %136 = vmatmul.mubr.bf16.gmra.mxu0 %v50
    %v137 = vpop.f32.mrf.mxu0
    %v138 = vadd.f32 0.0, %v137
    %v139 = vpop.f32.mrf.mxu0
    %v140 = vpop.f32.mrf.mxu0
    %v141 = vpop.f32.mrf.mxu0
    %142 = vdwg.mxu0
    %v143 = vpack.c.bf16 %v97, %v97
    %v144 = vpack.c.bf16 %v99, %v99
    %145 = vmatprep.subr.bf16.mxu0 0
    %146 = vmatpush1.bf16.xpose.msra.mxu0 0
    %147 = vmatprep.subr.bf16.mxu0 0
    %148 = vmatpush1.bf16.xpose.msra.mxu0 0
    %149 = vmatprep.subr.bf16.mxu0 0
    %150 = vmatpush1.bf16.xpose.msra.mxu0 0
    %151 = vmatprep.subr.bf16.mxu0 0
    %152 = vmatpush1.bf16.xpose.msra.mxu0 0
    %153 = vmatprep.subr.bf16.mxu0 0
    %154 = vmatpush1.bf16.xpose.msra.mxu0 0
    %155 = vmatprep.subr.bf16.mxu0 0
    %156 = vmatpush1.bf16.xpose.msra.mxu0 0
    %157 = vmatprep.subr.bf16.mxu0 0
    %158 = vmatpush1.bf16.xpose.msra.mxu0 0
    %159 = vmatprep.subr.bf16.mxu0 0
    %160 = vmatpush1.bf16.xpose.msra.mxu0 %v144
    %161 = vmatprep.subr.bf16.mxu0 0
    %162 = vmatpush2.bf16.xpose.msra.mxu0 0
    %163 = vmatprep.subr.bf16.mxu0 0
    %164 = vmatpush2.bf16.xpose.msra.mxu0 0
    %165 = vmatprep.subr.bf16.mxu0 0
    %166 = vmatpush2.bf16.xpose.msra.mxu0 0
    %167 = vmatprep.subr.bf16.mxu0 0
    %168 = vmatpush2.bf16.xpose.msra.mxu0 0
    %169 = vmatprep.subr.bf16.mxu0 0
    %170 = vmatpush2.bf16.xpose.msra.mxu0 0
    %171 = vmatprep.subr.bf16.mxu0 0
    %172 = vmatpush2.bf16.xpose.msra.mxu0 0
    %173 = vmatprep.subr.bf16.mxu0 0
    %174 = vmatpush2.bf16.xpose.msra.mxu0 0
    %175 = vmatprep.subr.bf16.mxu0 0
    %176 = vmatpush2.bf16.xpose.msra.mxu0 0
    %177 = vmatprep.mubr.bf16.mxu0 0
    %178 = vmatmul.mubr.bf16.gmra.mxu0 %v143
    %v179 = vpop.f32.mrf.mxu0
    %v180 = vadd.f32 0.0, %v179
    %v181 = vpop.f32.mrf.mxu0
    %v182 = vpop.f32.mrf.mxu0
    %v183 = vpop.f32.mrf.mxu0
    %184 = vdwg.mxu0
    %v185 = vlaneseq
    %v186 = vand.u32 %v185, 127
    %vm187 = vcmp.lt.s32.totalorder %v186, 6
    %v188 = vsel %vm187, %v180, -1e+30
    %v189 = vsel %vm48, %v188, -inf
    %190 = vmax.xlane.f32.xlu0 %v189
    %v191 = vpop.xlane.xlu0 %190
    %v192 = vsub.f32 %v188, %v191
    %v193 = vmul.f32 %v192, 1.442695
    %v194 = vpow.pop %v193
    %v195 = vsel %vm48, %v194, 0.0
    %196 = vadd.xlane.f32.xlu0 %v195
    %v197 = vpop.xlane.xlu0 %196
    %v198 = vrcp.pop %v197
    %v199 = vmul.f32 %v194, %v198
    %v200 = vpack.c.bf16 %v199, %v199
    %v201 = vpack.c.bf16 %v138, %v138
    %v203 = vsel %vm48, %v200, 0
    %v206 = vsel %vm52, %v201, 0
    %208 = vmatprep.subr.bf16.mxu0 0
    %209 = vmatpush1.bf16.msra.mxu0 0
    %210 = vmatprep.subr.bf16.mxu0 0
    %211 = vmatpush1.bf16.msra.mxu0 0
    %212 = vmatprep.subr.bf16.mxu0 0
    %213 = vmatpush1.bf16.msra.mxu0 0
    %214 = vmatprep.subr.bf16.mxu0 0
    %215 = vmatpush1.bf16.msra.mxu0 0
    %216 = vmatprep.subr.bf16.mxu0 0
    %217 = vmatpush1.bf16.msra.mxu0 0
    %218 = vmatprep.subr.bf16.mxu0 0
    %219 = vmatpush1.bf16.msra.mxu0 0
    %220 = vmatprep.subr.bf16.mxu0 0
    %221 = vmatpush1.bf16.msra.mxu0 0
    %222 = vmatprep.subr.bf16.mxu0 0
    %223 = vmatpush1.bf16.msra.mxu0 %v206
    %224 = vmatprep.subr.bf16.mxu0 0
    %225 = vmatpush2.bf16.msra.mxu0 0
    %226 = vmatprep.subr.bf16.mxu0 0
    %227 = vmatpush2.bf16.msra.mxu0 0
    %228 = vmatprep.subr.bf16.mxu0 0
    %229 = vmatpush2.bf16.msra.mxu0 0
    %230 = vmatprep.subr.bf16.mxu0 0
    %231 = vmatpush2.bf16.msra.mxu0 0
    %232 = vmatprep.subr.bf16.mxu0 0
    %233 = vmatpush2.bf16.msra.mxu0 0
    %234 = vmatprep.subr.bf16.mxu0 0
    %235 = vmatpush2.bf16.msra.mxu0 0
    %236 = vmatprep.subr.bf16.mxu0 0
    %237 = vmatpush2.bf16.msra.mxu0 0
    %238 = vmatprep.subr.bf16.mxu0 0
    %239 = vmatpush2.bf16.msra.mxu0 0
    %240 = vmatprep.mubr.bf16.mxu0 0
    %241 = vmatmul.mubr.bf16.gmra.mxu0 %v203
    %v242 = vpop.f32.mrf.mxu0
    %v243 = vadd.f32 0.0, %v242
    %v244 = vpop.f32.mrf.mxu0
    %v245 = vpop.f32.mrf.mxu0
    %v246 = vpop.f32.mrf.mxu0
    %247 = vdwg.mxu0
    %248 = vst [vmem:[#allocation7] sm:$0xff] %v243
    // Predicated region
    $region18: #{tpu_custom_call.1} parent=1 // pred_check
      _
    $region19: #{tpu_custom_call.1} parent=1 // pred_check_branch
      %250 = sbr.rel (0) target = $region21
    $region20: #{tpu_custom_call.1} parent=1 // pred_region
      %s252 = ssub.s32 128, 128
      %253 = vsyncadd [#allocation4], %s252
      %s255 = sshll.u32 [#allocation7], 4
      %s256 = int_to_ptr.vmem [resolvable:$true] %s255
      %258 = dma.vmem_to_hbm [thread:$0]  %s256, 128, %s2, [#allocation4]
    $region21: #{tpu_custom_call.1} parent=1 // pred_fallthru
      _
    // Predicated region
    $region22: #{tpu_custom_call.1} parent=1 // pred_check
      _
    $region23: #{tpu_custom_call.1} parent=1 // pred_check_branch
      %260 = sbr.rel (0) target = $region25
    $region24: #{tpu_custom_call.1} parent=1 // pred_region
      %261 = dma.done [#allocation4], 128
    $region25: #{tpu_custom_call.1} parent=1 // pred_fallthru
      _
    %262 = vsyncpa [#allocation3], 1
    %263 = vsyncpa [#allocation6], 1
    %264 = vsyncpa [#allocation4], 1

</llo_original>
